<compile_context>
chip_gen: v5e
topology: v5e:2x2
jax: 0.10.0
libtpu: 0.0.40
codegen_flags: <defaults>
</compile_context>

<pallas_src>
import jax
import jax.numpy as jnp
from jax.experimental import pallas as pl
from jax.experimental.pallas import tpu as pltpu


# ----------------------------- helpers ---------------------------------------
def _round_up(n, m):
    return ((n + m - 1) // m) * m


def _layernorm(h, gamma, beta, eps=1e-5):
    # PyTorch nn.LayerNorm: biased variance over last dim, eps inside sqrt.
    mean = jnp.mean(h, axis=-1, keepdims=True)
    var = jnp.mean((h - mean) ** 2, axis=-1, keepdims=True)
    return (h - mean) * jax.lax.rsqrt(var + eps) * gamma + beta


# ----------------------------- Pallas kernel ---------------------------------
def hiv_dqn_kernel(x_ref, w_in_ref, w_iv_ref, w_c1_ref, w_c2_ref, vec_ref, out_ref):
    x = x_ref[...]                       # (TB, 6)
    vec = vec_ref[...]                   # (16, 128) packed biases / LN params

    b_in = vec[0:1, :64]
    g_in = vec[1:2, :64]
    be_in = vec[2:3, :64]
    b_iv = vec[3:4, :64]
    g_iv = vec[4:5, :64]
    be_iv = vec[5:6, :64]
    b_c1 = vec[6:7, :32]
    g_c1 = vec[7:8, :32]
    be_c1 = vec[8:9, :32]
    b_c2 = vec[9:10, :]                  # (1, 128), lanes 4.. are zero

    # ---- input_layer: Linear(6,64) as 6 VPU broadcast-FMAs -> LN -> ReLU ----
    # K=6 is far below MXU contraction width; keep it on the VPU.
    w_in = w_in_ref[...]                 # (6, 64)
    h = x[:, 0:1] * w_in[0:1, :]
    for kf in range(1, 6):               # static unroll
        h = h + x[:, kf:kf + 1] * w_in[kf:kf + 1, :]
    h = h + b_in
    h = jnp.maximum(_layernorm(h, g_in, be_in), 0.0)          # (TB, 64)

    # ---- fused immune|viral: one (64,64) matmul, per-half LayerNorm, ReLU ----
    iv = jnp.dot(h, w_iv_ref[...], preferred_element_type=jnp.float32) + b_iv  # (TB,64)
    imm = iv[:, :32]
    vir = iv[:, 32:]
    m_i = jnp.mean(imm, axis=-1, keepdims=True)
    v_i = jnp.mean((imm - m_i) ** 2, axis=-1, keepdims=True)
    m_v = jnp.mean(vir, axis=-1, keepdims=True)
    v_v = jnp.mean((vir - m_v) ** 2, axis=-1, keepdims=True)
    lane = jax.lax.broadcasted_iota(jnp.int32, (1, 64), 1)
    first_half = lane < 32
    mean64 = jnp.where(first_half, m_i, m_v)
    var64 = jnp.where(first_half, v_i, v_v)
    inv64 = jax.lax.rsqrt(var64 + 1e-5)                       # single EUP pass
    iv = jnp.maximum((iv - mean64) * inv64 * g_iv + be_iv, 0.0)  # (TB, 64)

    # ---- combine: Linear(64,32) -> LN -> ReLU -> Linear(32, 128 padded) ----
    c = jnp.dot(iv, w_c1_ref[...], preferred_element_type=jnp.float32) + b_c1
    c = jnp.maximum(_layernorm(c, g_c1, be_c1), 0.0)             # (TB, 32)
    q = jnp.dot(c, w_c2_ref[...], preferred_element_type=jnp.float32) + b_c2
    out_ref[...] = q.astype(out_ref.dtype)                       # (TB, 128), lanes 0..3 real


# ------------------------------- Wrapper --------------------------------------
@jax.jit
def hiv_dqn_forward(x, kparams):
    B = x.shape[0]
    # 512-row tiles: big enough to amortize per-step overhead (~0.35 us),
    # small enough that double-buffered (512,128) f32 outputs stay tiny in VMEM,
    # and padding waste for ragged batches stays bounded.
    TILE_B = min(512, _round_up(max(B, 1), 8))
    B_pad = _round_up(B, TILE_B)
    if B_pad != B:
        x = jnp.pad(x, ((0, B_pad - B), (0, 0)))

    out = pl.pallas_call(
        hiv_dqn_kernel,
        out_shape=jax.ShapeDtypeStruct((B_pad, 128), jnp.float32),
        grid_spec=pltpu.PrefetchScalarGridSpec(
            num_scalar_prefetch=0,
            grid=(B_pad // TILE_B,),
            in_specs=[
                pl.BlockSpec((TILE_B, 6), lambda i: (i, 0)),     # x tile (pipelined)
                pl.BlockSpec((6, 64), lambda i: (0, 0)),         # w_in   (resident)
                pl.BlockSpec((64, 64), lambda i: (0, 0)),        # w_iv   (resident)
                pl.BlockSpec((64, 32), lambda i: (0, 0)),        # w_c1   (resident)
                pl.BlockSpec((32, 128), lambda i: (0, 0)),       # w_c2p  (resident)
                pl.BlockSpec((16, 128), lambda i: (0, 0)),       # packed vec params
            ],
            out_specs=pl.BlockSpec((TILE_B, 128), lambda i: (i, 0)),
        ),
        compiler_params=pltpu.CompilerParams(dimension_semantics=("parallel",)),
    )(x, kparams["w_in"], kparams["w_iv"], kparams["w_c1"],
      kparams["w_c2p"], kparams["vec"])
    return out[:B, :4]


# --------------------------- Parameter init -----------------------------------
def init_params(key):
    """Raw params matching the PyTorch module (weights stored as [in, out]).

    Linear weights: kaiming_normal_(fan_in, relu) -> std = sqrt(2/fan_in).
    Linear biases : PyTorch default uniform(+-1/sqrt(fan_in)).
    LayerNorm     : gamma = 1, beta = 0.
    """
    def linear(key, fan_in, fan_out):
        kw, kb = jax.random.split(key)
        std = (2.0 / fan_in) ** 0.5
        w = jax.random.normal(kw, (fan_in, fan_out), jnp.float32) * std
        bound = 1.0 / (fan_in ** 0.5)
        b = jax.random.uniform(kb, (fan_out,), jnp.float32, -bound, bound)
        return w, b

    k = jax.random.split(key, 5)
    w_in, b_in = linear(k[0], 6, 64)
    w_im, b_im = linear(k[1], 64, 32)
    w_vi, b_vi = linear(k[2], 64, 32)
    w_c1, b_c1 = linear(k[3], 64, 32)
    w_c2, b_c2 = linear(k[4], 32, 4)

    ones = lambda n: jnp.ones((n,), jnp.float32)
    zeros = lambda n: jnp.zeros((n,), jnp.float32)
    return dict(
        w_in=w_in, b_in=b_in, g_in=ones(64), be_in=zeros(64),
        w_im=w_im, b_im=b_im, g_im=ones(32), be_im=zeros(32),
        w_vi=w_vi, b_vi=b_vi, g_vi=ones(32), be_vi=zeros(32),
        w_c1=w_c1, b_c1=b_c1, g_c1=ones(32), be_c1=zeros(32),
        w_c2=w_c2, b_c2=b_c2,
    )


def pack_params(p):
    """Fuse/pack raw params into the 6 operands the kernel consumes."""
    w_iv = jnp.concatenate([p["w_im"], p["w_vi"]], axis=1)          # (64, 64)
    w_c2p = jnp.zeros((32, 128), jnp.float32).at[:, :4].set(p["w_c2"])

    def row(v, width=128):
        v = jnp.asarray(v, jnp.float32).reshape(-1)
        return jnp.pad(v, (0, width - v.shape[0]))

    rows = [
        row(p["b_in"]), row(p["g_in"]), row(p["be_in"]),
        row(jnp.concatenate([p["b_im"], p["b_vi"]])),
        row(jnp.concatenate([p["g_im"], p["g_vi"]])),
        row(jnp.concatenate([p["be_im"], p["be_vi"]])),
        row(p["b_c1"]), row(p["g_c1"]), row(p["be_c1"]),
        row(p["b_c2"]),
    ]
    vec = jnp.pad(jnp.stack(rows), ((0, 16 - len(rows)), (0, 0)))   # (16, 128)
    return dict(w_in=p["w_in"], w_iv=w_iv, w_c1=p["w_c1"], w_c2p=w_c2p, vec=vec)


# ---------------------------- Pure-JAX reference -------------------------------
def reference_forward(x, p):
    def ln(h, g, b, eps=1e-5):
        m = jnp.mean(h, -1, keepdims=True)
        v = jnp.mean((h - m) ** 2, -1, keepdims=True)
        return (h - m) / jnp.sqrt(v + eps) * g + b

    h = jnp.maximum(ln(x @ p["w_in"] + p["b_in"], p["g_in"], p["be_in"]), 0.0)
    imm = jnp.maximum(ln(h @ p["w_im"] + p["b_im"], p["g_im"], p["be_im"]), 0.0)
    vir = jnp.maximum(ln(h @ p["w_vi"] + p["b_vi"], p["g_vi"], p["be_vi"]), 0.0)
    comb = jnp.concatenate([imm, vir], -1)
    c = jnp.maximum(ln(comb @ p["w_c1"] + p["b_c1"], p["g_c1"], p["be_c1"]), 0.0)
    return c @ p["w_c2"] + p["b_c2"]


if __name__ == "__main__":
    key = jax.random.PRNGKey(0)
    k_params, k_x = jax.random.split(key)
    raw = init_params(k_params)
    kparams = pack_params(raw)

    B = 8  # HIV treatment state vector has 6 features
    x = jax.random.normal(k_x, (B, 6), jnp.float32)

    q = hiv_dqn_forward(x, kparams)
    jax.block_until_ready(q)

    q_ref = reference_forward(x, raw)
    assert q.shape == (B, 4)
    assert jnp.allclose(q, q_ref, atol=1e-4, rtol=1e-4), "mismatch vs reference"

    print("KERNEL_OK")
</pallas_src>

<mosaic_0001>
module attributes {stable_mosaic.version = 11 : i64} {
  func.func @hiv_dqn_kernel(%arg0: i32, %arg1: memref<8x6xf32, #tpu.memory_space<vmem>>, %arg2: memref<6x64xf32, #tpu.memory_space<vmem>>, %arg3: memref<64x64xf32, #tpu.memory_space<vmem>>, %arg4: memref<64x32xf32, #tpu.memory_space<vmem>>, %arg5: memref<32x128xf32, #tpu.memory_space<vmem>>, %arg6: memref<16x128xf32, #tpu.memory_space<vmem>>, %arg7: memref<8x128xf32, #tpu.memory_space<vmem>>) attributes {dimension_semantics = [#tpu.dimension_semantics<parallel>], iteration_bounds = array<i64: 1>, scalar_prefetch = 0 : i64, scratch_operands = 0 : i64, tpu.core_type = #tpu.core_type<tc>, window_params = [{transform_indices = @transform_0, window_bounds = array<i64: 8, 6>}, {pipeline_mode = #tpu.pipeline_mode<synchronous>, transform_indices = @transform_1, window_bounds = array<i64: 6, 64>}, {pipeline_mode = #tpu.pipeline_mode<synchronous>, transform_indices = @transform_2, window_bounds = array<i64: 64, 64>}, {pipeline_mode = #tpu.pipeline_mode<synchronous>, transform_indices = @transform_3, window_bounds = array<i64: 64, 32>}, {pipeline_mode = #tpu.pipeline_mode<synchronous>, transform_indices = @transform_4, window_bounds = array<i64: 32, 128>}, {pipeline_mode = #tpu.pipeline_mode<synchronous>, transform_indices = @transform_5, window_bounds = array<i64: 16, 128>}, {transform_indices = @transform_6, window_bounds = array<i64: 8, 128>}]} {
    %c0 = arith.constant 0 : index
    %c0_0 = arith.constant 0 : index
    %0 = vector.load %arg1[%c0, %c0_0] : memref<8x6xf32, #tpu.memory_space<vmem>>, vector<8x6xf32>
    %c0_1 = arith.constant 0 : index
    %c0_2 = arith.constant 0 : index
    %1 = vector.load %arg6[%c0_1, %c0_2] : memref<16x128xf32, #tpu.memory_space<vmem>>, vector<16x128xf32>
    %2 = vector.extract_strided_slice %1 {offsets = [0, 0], sizes = [1, 64], strides = [1, 1]} : vector<16x128xf32> to vector<1x64xf32>
    %3 = vector.extract_strided_slice %1 {offsets = [1, 0], sizes = [1, 64], strides = [1, 1]} : vector<16x128xf32> to vector<1x64xf32>
    %4 = vector.extract_strided_slice %1 {offsets = [2, 0], sizes = [1, 64], strides = [1, 1]} : vector<16x128xf32> to vector<1x64xf32>
    %5 = vector.extract_strided_slice %1 {offsets = [3, 0], sizes = [1, 64], strides = [1, 1]} : vector<16x128xf32> to vector<1x64xf32>
    %6 = vector.extract_strided_slice %1 {offsets = [4, 0], sizes = [1, 64], strides = [1, 1]} : vector<16x128xf32> to vector<1x64xf32>
    %7 = vector.extract_strided_slice %1 {offsets = [5, 0], sizes = [1, 64], strides = [1, 1]} : vector<16x128xf32> to vector<1x64xf32>
    %8 = vector.extract_strided_slice %1 {offsets = [6, 0], sizes = [1, 32], strides = [1, 1]} : vector<16x128xf32> to vector<1x32xf32>
    %9 = vector.extract_strided_slice %1 {offsets = [7, 0], sizes = [1, 32], strides = [1, 1]} : vector<16x128xf32> to vector<1x32xf32>
    %10 = vector.extract_strided_slice %1 {offsets = [8, 0], sizes = [1, 32], strides = [1, 1]} : vector<16x128xf32> to vector<1x32xf32>
    %11 = vector.extract_strided_slice %1 {offsets = [9, 0], sizes = [1, 128], strides = [1, 1]} : vector<16x128xf32> to vector<1x128xf32>
    %c0_3 = arith.constant 0 : index
    %c0_4 = arith.constant 0 : index
    %12 = vector.load %arg2[%c0_3, %c0_4] : memref<6x64xf32, #tpu.memory_space<vmem>>, vector<6x64xf32>
    %13 = vector.extract_strided_slice %0 {offsets = [0, 0], sizes = [8, 1], strides = [1, 1]} : vector<8x6xf32> to vector<8x1xf32>
    %14 = vector.extract_strided_slice %12 {offsets = [0, 0], sizes = [1, 64], strides = [1, 1]} : vector<6x64xf32> to vector<1x64xf32>
    %15 = vector.broadcast %13 : vector<8x1xf32> to vector<8x64xf32>
    %16 = vector.broadcast %14 : vector<1x64xf32> to vector<8x64xf32>
    %17 = arith.mulf %15, %16 : vector<8x64xf32>
    %18 = vector.extract_strided_slice %0 {offsets = [0, 1], sizes = [8, 1], strides = [1, 1]} : vector<8x6xf32> to vector<8x1xf32>
    %19 = vector.extract_strided_slice %12 {offsets = [1, 0], sizes = [1, 64], strides = [1, 1]} : vector<6x64xf32> to vector<1x64xf32>
    %20 = vector.broadcast %18 : vector<8x1xf32> to vector<8x64xf32>
    %21 = vector.broadcast %19 : vector<1x64xf32> to vector<8x64xf32>
    %22 = arith.mulf %20, %21 : vector<8x64xf32>
    %23 = arith.addf %17, %22 : vector<8x64xf32>
    %24 = vector.extract_strided_slice %0 {offsets = [0, 2], sizes = [8, 1], strides = [1, 1]} : vector<8x6xf32> to vector<8x1xf32>
    %25 = vector.extract_strided_slice %12 {offsets = [2, 0], sizes = [1, 64], strides = [1, 1]} : vector<6x64xf32> to vector<1x64xf32>
    %26 = vector.broadcast %24 : vector<8x1xf32> to vector<8x64xf32>
    %27 = vector.broadcast %25 : vector<1x64xf32> to vector<8x64xf32>
    %28 = arith.mulf %26, %27 : vector<8x64xf32>
    %29 = arith.addf %23, %28 : vector<8x64xf32>
    %30 = vector.extract_strided_slice %0 {offsets = [0, 3], sizes = [8, 1], strides = [1, 1]} : vector<8x6xf32> to vector<8x1xf32>
    %31 = vector.extract_strided_slice %12 {offsets = [3, 0], sizes = [1, 64], strides = [1, 1]} : vector<6x64xf32> to vector<1x64xf32>
    %32 = vector.broadcast %30 : vector<8x1xf32> to vector<8x64xf32>
    %33 = vector.broadcast %31 : vector<1x64xf32> to vector<8x64xf32>
    %34 = arith.mulf %32, %33 : vector<8x64xf32>
    %35 = arith.addf %29, %34 : vector<8x64xf32>
    %36 = vector.extract_strided_slice %0 {offsets = [0, 4], sizes = [8, 1], strides = [1, 1]} : vector<8x6xf32> to vector<8x1xf32>
    %37 = vector.extract_strided_slice %12 {offsets = [4, 0], sizes = [1, 64], strides = [1, 1]} : vector<6x64xf32> to vector<1x64xf32>
    %38 = vector.broadcast %36 : vector<8x1xf32> to vector<8x64xf32>
    %39 = vector.broadcast %37 : vector<1x64xf32> to vector<8x64xf32>
    %40 = arith.mulf %38, %39 : vector<8x64xf32>
    %41 = arith.addf %35, %40 : vector<8x64xf32>
    %42 = vector.extract_strided_slice %0 {offsets = [0, 5], sizes = [8, 1], strides = [1, 1]} : vector<8x6xf32> to vector<8x1xf32>
    %43 = vector.extract_strided_slice %12 {offsets = [5, 0], sizes = [1, 64], strides = [1, 1]} : vector<6x64xf32> to vector<1x64xf32>
    %44 = vector.broadcast %42 : vector<8x1xf32> to vector<8x64xf32>
    %45 = vector.broadcast %43 : vector<1x64xf32> to vector<8x64xf32>
    %46 = arith.mulf %44, %45 : vector<8x64xf32>
    %47 = arith.addf %41, %46 : vector<8x64xf32>
    %48 = vector.broadcast %2 : vector<1x64xf32> to vector<8x64xf32>
    %49 = arith.addf %47, %48 : vector<8x64xf32>
    %cst = arith.constant dense<0.000000e+00> : vector<8xf32>
    %50 = vector.multi_reduction <add>, %49, %cst [1] : vector<8x64xf32> to vector<8xf32>
    %51 = vector.shape_cast %50 : vector<8xf32> to vector<8x1xf32>
    %cst_5 = arith.constant 6.400000e+01 : f32
    %52 = vector.broadcast %cst_5 : f32 to vector<8x1xf32>
    %53 = arith.divf %51, %52 : vector<8x1xf32>
    %54 = vector.broadcast %53 : vector<8x1xf32> to vector<8x64xf32>
    %55 = arith.subf %49, %54 : vector<8x64xf32>
    %56 = arith.mulf %55, %55 : vector<8x64xf32>
    %cst_6 = arith.constant dense<0.000000e+00> : vector<8xf32>
    %57 = vector.multi_reduction <add>, %56, %cst_6 [1] : vector<8x64xf32> to vector<8xf32>
    %58 = vector.shape_cast %57 : vector<8xf32> to vector<8x1xf32>
    %cst_7 = arith.constant 6.400000e+01 : f32
    %59 = vector.broadcast %cst_7 : f32 to vector<8x1xf32>
    %60 = arith.divf %58, %59 : vector<8x1xf32>
    %61 = vector.broadcast %53 : vector<8x1xf32> to vector<8x64xf32>
    %62 = arith.subf %49, %61 : vector<8x64xf32>
    %cst_8 = arith.constant 9.99999974E-6 : f32
    %63 = vector.broadcast %cst_8 : f32 to vector<8x1xf32>
    %64 = arith.addf %60, %63 : vector<8x1xf32>
    %65 = math.rsqrt %64 : vector<8x1xf32>
    %66 = vector.broadcast %65 : vector<8x1xf32> to vector<8x64xf32>
    %67 = arith.mulf %62, %66 : vector<8x64xf32>
    %68 = vector.broadcast %3 : vector<1x64xf32> to vector<8x64xf32>
    %69 = arith.mulf %67, %68 : vector<8x64xf32>
    %70 = vector.broadcast %4 : vector<1x64xf32> to vector<8x64xf32>
    %71 = arith.addf %69, %70 : vector<8x64xf32>
    %cst_9 = arith.constant 0.000000e+00 : f32
    %72 = vector.broadcast %cst_9 : f32 to vector<8x64xf32>
    %73 = arith.maximumf %71, %72 : vector<8x64xf32>
    %c0_10 = arith.constant 0 : index
    %c0_11 = arith.constant 0 : index
    %74 = vector.load %arg3[%c0_10, %c0_11] : memref<64x64xf32, #tpu.memory_space<vmem>>, vector<64x64xf32>
    %cst_12 = arith.constant dense<0.000000e+00> : vector<8x64xf32>
    %75 = tpu.matmul %73, %74, %cst_12 {dimension_numbers = #tpu.dot_dimension_numbers<[1], [0], [0], [1], [0, 0, 1, 1], [], []>} : vector<8x64xf32>, vector<64x64xf32>, vector<8x64xf32> -> vector<8x64xf32>
    %76 = vector.broadcast %5 : vector<1x64xf32> to vector<8x64xf32>
    %77 = arith.addf %75, %76 : vector<8x64xf32>
    %78 = vector.extract_strided_slice %77 {offsets = [0, 0], sizes = [8, 32], strides = [1, 1]} : vector<8x64xf32> to vector<8x32xf32>
    %79 = vector.extract_strided_slice %77 {offsets = [0, 32], sizes = [8, 32], strides = [1, 1]} : vector<8x64xf32> to vector<8x32xf32>
    %cst_13 = arith.constant dense<0.000000e+00> : vector<8xf32>
    %80 = vector.multi_reduction <add>, %78, %cst_13 [1] : vector<8x32xf32> to vector<8xf32>
    %81 = vector.shape_cast %80 : vector<8xf32> to vector<8x1xf32>
    %cst_14 = arith.constant 3.200000e+01 : f32
    %82 = vector.broadcast %cst_14 : f32 to vector<8x1xf32>
    %83 = arith.divf %81, %82 : vector<8x1xf32>
    %84 = vector.broadcast %83 : vector<8x1xf32> to vector<8x32xf32>
    %85 = arith.subf %78, %84 : vector<8x32xf32>
    %86 = arith.mulf %85, %85 : vector<8x32xf32>
    %cst_15 = arith.constant dense<0.000000e+00> : vector<8xf32>
    %87 = vector.multi_reduction <add>, %86, %cst_15 [1] : vector<8x32xf32> to vector<8xf32>
    %88 = vector.shape_cast %87 : vector<8xf32> to vector<8x1xf32>
    %cst_16 = arith.constant 3.200000e+01 : f32
    %89 = vector.broadcast %cst_16 : f32 to vector<8x1xf32>
    %90 = arith.divf %88, %89 : vector<8x1xf32>
    %cst_17 = arith.constant dense<0.000000e+00> : vector<8xf32>
    %91 = vector.multi_reduction <add>, %79, %cst_17 [1] : vector<8x32xf32> to vector<8xf32>
    %92 = vector.shape_cast %91 : vector<8xf32> to vector<8x1xf32>
    %cst_18 = arith.constant 3.200000e+01 : f32
    %93 = vector.broadcast %cst_18 : f32 to vector<8x1xf32>
    %94 = arith.divf %92, %93 : vector<8x1xf32>
    %95 = vector.broadcast %94 : vector<8x1xf32> to vector<8x32xf32>
    %96 = arith.subf %79, %95 : vector<8x32xf32>
    %97 = arith.mulf %96, %96 : vector<8x32xf32>
    %cst_19 = arith.constant dense<0.000000e+00> : vector<8xf32>
    %98 = vector.multi_reduction <add>, %97, %cst_19 [1] : vector<8x32xf32> to vector<8xf32>
    %99 = vector.shape_cast %98 : vector<8xf32> to vector<8x1xf32>
    %cst_20 = arith.constant 3.200000e+01 : f32
    %100 = vector.broadcast %cst_20 : f32 to vector<8x1xf32>
    %101 = arith.divf %99, %100 : vector<8x1xf32>
    %102 = tpu.iota {dimensions = array<i32: 1>} : vector<1x64xi32>
    %c32_i32 = arith.constant 32 : i32
    %103 = vector.broadcast %c32_i32 : i32 to vector<1x64xi32>
    %104 = arith.cmpi slt, %102, %103 : vector<1x64xi32>
    %105 = vector.shape_cast %104 : vector<1x64xi1> to vector<1x64xi1>
    %106 = vector.broadcast %105 : vector<1x64xi1> to vector<8x64xi1>
    %107 = vector.shape_cast %83 : vector<8x1xf32> to vector<8x1xf32>
    %108 = vector.broadcast %107 : vector<8x1xf32> to vector<8x64xf32>
    %109 = vector.shape_cast %94 : vector<8x1xf32> to vector<8x1xf32>
    %110 = vector.broadcast %109 : vector<8x1xf32> to vector<8x64xf32>
    %111 = arith.select %106, %108, %110 : vector<8x64xi1>, vector<8x64xf32>
    %112 = vector.shape_cast %104 : vector<1x64xi1> to vector<1x64xi1>
    %113 = vector.broadcast %112 : vector<1x64xi1> to vector<8x64xi1>
    %114 = vector.shape_cast %90 : vector<8x1xf32> to vector<8x1xf32>
    %115 = vector.broadcast %114 : vector<8x1xf32> to vector<8x64xf32>
    %116 = vector.shape_cast %101 : vector<8x1xf32> to vector<8x1xf32>
    %117 = vector.broadcast %116 : vector<8x1xf32> to vector<8x64xf32>
    %118 = arith.select %113, %115, %117 : vector<8x64xi1>, vector<8x64xf32>
    %cst_21 = arith.constant 9.99999974E-6 : f32
    %119 = vector.broadcast %cst_21 : f32 to vector<8x64xf32>
    %120 = arith.addf %118, %119 : vector<8x64xf32>
    %121 = math.rsqrt %120 : vector<8x64xf32>
    %122 = arith.subf %77, %111 : vector<8x64xf32>
    %123 = arith.mulf %122, %121 : vector<8x64xf32>
    %124 = vector.broadcast %6 : vector<1x64xf32> to vector<8x64xf32>
    %125 = arith.mulf %123, %124 : vector<8x64xf32>
    %126 = vector.broadcast %7 : vector<1x64xf32> to vector<8x64xf32>
    %127 = arith.addf %125, %126 : vector<8x64xf32>
    %cst_22 = arith.constant 0.000000e+00 : f32
    %128 = vector.broadcast %cst_22 : f32 to vector<8x64xf32>
    %129 = arith.maximumf %127, %128 : vector<8x64xf32>
    %c0_23 = arith.constant 0 : index
    %c0_24 = arith.constant 0 : index
    %130 = vector.load %arg4[%c0_23, %c0_24] : memref<64x32xf32, #tpu.memory_space<vmem>>, vector<64x32xf32>
    %cst_25 = arith.constant dense<0.000000e+00> : vector<8x32xf32>
    %131 = tpu.matmul %129, %130, %cst_25 {dimension_numbers = #tpu.dot_dimension_numbers<[1], [0], [0], [1], [0, 0, 1, 1], [], []>} : vector<8x64xf32>, vector<64x32xf32>, vector<8x32xf32> -> vector<8x32xf32>
    %132 = vector.broadcast %8 : vector<1x32xf32> to vector<8x32xf32>
    %133 = arith.addf %131, %132 : vector<8x32xf32>
    %cst_26 = arith.constant dense<0.000000e+00> : vector<8xf32>
    %134 = vector.multi_reduction <add>, %133, %cst_26 [1] : vector<8x32xf32> to vector<8xf32>
    %135 = vector.shape_cast %134 : vector<8xf32> to vector<8x1xf32>
    %cst_27 = arith.constant 3.200000e+01 : f32
    %136 = vector.broadcast %cst_27 : f32 to vector<8x1xf32>
    %137 = arith.divf %135, %136 : vector<8x1xf32>
    %138 = vector.broadcast %137 : vector<8x1xf32> to vector<8x32xf32>
    %139 = arith.subf %133, %138 : vector<8x32xf32>
    %140 = arith.mulf %139, %139 : vector<8x32xf32>
    %cst_28 = arith.constant dense<0.000000e+00> : vector<8xf32>
    %141 = vector.multi_reduction <add>, %140, %cst_28 [1] : vector<8x32xf32> to vector<8xf32>
    %142 = vector.shape_cast %141 : vector<8xf32> to vector<8x1xf32>
    %cst_29 = arith.constant 3.200000e+01 : f32
    %143 = vector.broadcast %cst_29 : f32 to vector<8x1xf32>
    %144 = arith.divf %142, %143 : vector<8x1xf32>
    %145 = vector.broadcast %137 : vector<8x1xf32> to vector<8x32xf32>
    %146 = arith.subf %133, %145 : vector<8x32xf32>
    %cst_30 = arith.constant 9.99999974E-6 : f32
    %147 = vector.broadcast %cst_30 : f32 to vector<8x1xf32>
    %148 = arith.addf %144, %147 : vector<8x1xf32>
    %149 = math.rsqrt %148 : vector<8x1xf32>
    %150 = vector.broadcast %149 : vector<8x1xf32> to vector<8x32xf32>
    %151 = arith.mulf %146, %150 : vector<8x32xf32>
    %152 = vector.broadcast %9 : vector<1x32xf32> to vector<8x32xf32>
    %153 = arith.mulf %151, %152 : vector<8x32xf32>
    %154 = vector.broadcast %10 : vector<1x32xf32> to vector<8x32xf32>
    %155 = arith.addf %153, %154 : vector<8x32xf32>
    %cst_31 = arith.constant 0.000000e+00 : f32
    %156 = vector.broadcast %cst_31 : f32 to vector<8x32xf32>
    %157 = arith.maximumf %155, %156 : vector<8x32xf32>
    %c0_32 = arith.constant 0 : index
    %c0_33 = arith.constant 0 : index
    %158 = vector.load %arg5[%c0_32, %c0_33] : memref<32x128xf32, #tpu.memory_space<vmem>>, vector<32x128xf32>
    %cst_34 = arith.constant dense<0.000000e+00> : vector<8x128xf32>
    %159 = tpu.matmul %157, %158, %cst_34 {dimension_numbers = #tpu.dot_dimension_numbers<[1], [0], [0], [1], [0, 0, 1, 1], [], []>} : vector<8x32xf32>, vector<32x128xf32>, vector<8x128xf32> -> vector<8x128xf32>
    %160 = vector.broadcast %11 : vector<1x128xf32> to vector<8x128xf32>
    %161 = arith.addf %159, %160 : vector<8x128xf32>
    %c0_35 = arith.constant 0 : index
    %c0_36 = arith.constant 0 : index
    %162 = vector.load %arg7[%c0_35, %c0_36] : memref<8x128xf32, #tpu.memory_space<vmem>>, vector<8x128xf32>
    tpu.vector_store %arg7[%c0_35, %c0_36], %161 {strides = array<i32>} : memref<8x128xf32, #tpu.memory_space<vmem>>, vector<8x128xf32>,
    return
  }
  func.func @transform_0(%arg0: i32) -> (i32, i32) {
    %c0_i32 = arith.constant 0 : i32
    %c0_i32_0 = arith.constant 0 : i32
    return %arg0, %c0_i32 : i32, i32
  }
  func.func @transform_1(%arg0: i32) -> (i32, i32) {
    %c0_i32 = arith.constant 0 : i32
    %c0_i32_0 = arith.constant 0 : i32
    %c0_i32_1 = arith.constant 0 : i32
    return %c0_i32, %c0_i32_0 : i32, i32
  }
  func.func @transform_2(%arg0: i32) -> (i32, i32) {
    %c0_i32 = arith.constant 0 : i32
    %c0_i32_0 = arith.constant 0 : i32
    %c0_i32_1 = arith.constant 0 : i32
    return %c0_i32, %c0_i32_0 : i32, i32
  }
  func.func @transform_3(%arg0: i32) -> (i32, i32) {
    %c0_i32 = arith.constant 0 : i32
    %c0_i32_0 = arith.constant 0 : i32
    %c0_i32_1 = arith.constant 0 : i32
    return %c0_i32, %c0_i32_0 : i32, i32
  }
  func.func @transform_4(%arg0: i32) -> (i32, i32) {
    %c0_i32 = arith.constant 0 : i32
    %c0_i32_0 = arith.constant 0 : i32
    %c0_i32_1 = arith.constant 0 : i32
    return %c0_i32, %c0_i32_0 : i32, i32
  }
  func.func @transform_5(%arg0: i32) -> (i32, i32) {
    %c0_i32 = arith.constant 0 : i32
    %c0_i32_0 = arith.constant 0 : i32
    %c0_i32_1 = arith.constant 0 : i32
    return %c0_i32, %c0_i32_0 : i32, i32
  }
  func.func @transform_6(%arg0: i32) -> (i32, i32) {
    %c0_i32 = arith.constant 0 : i32
    %c0_i32_0 = arith.constant 0 : i32
    return %arg0, %c0_i32 : i32, i32
  }
}

</mosaic_0001>

<llo_original>
// kernel: hiv_dqn_forward.1
$region0: #{hiv_dqn_forward.1}
  #allocation0 [shape = 'u32[]', space=smem, size = 0x4, offset = 0x4, fixed_abs, tag = 'smem constant byte address 0x4 - core index']
  #allocation1 [shape = 'u32[72,128]{1,0:T(1,128)}', space=vmem, size = 0x9000, scoped, tag = 'internal scratch']
  %s0 = inlined_call_operand.hbm [shape: f32[8,6], index: 0, kind: input, shape index: {}]
  %s1 = inlined_call_operand.hbm [shape: f32[6,64], index: 1, kind: input, shape index: {}]
  %s2 = inlined_call_operand.vmem [shape: f32[64,64], index: 2, kind: input, shape index: {}]
  %s3 = inlined_call_operand.vmem [shape: f32[64,32], index: 3, kind: input, shape index: {}]
  %s4 = inlined_call_operand.vmem [shape: f32[32,128], index: 4, kind: input, shape index: {}]
  %s5 = inlined_call_operand.hbm [shape: f32[16,128], index: 5, kind: input, shape index: {}]
  %s6 = inlined_call_operand.vmem [shape: f32[8,128], index: 6, kind: output, shape index: {}]
  %s7 = sld [smem:[#allocation0]]
  $region46: #{hiv_dqn_forward.1} parent=0
    _
  %s9 = ssub.s32 1, %s7
  %s10 = scalar_select 0, %s9, %s7
  $region1: #{hiv_dqn_forward.1} parent=0
    #allocation2 [shape = 'u8[4096]{0}', space=vmem, size = 0x1000, scoped, tag = 'input window, operand 0, single buffered']
    #allocation3 [shape = 's32[1]{0}', space=sflag, size = 0x4, scoped, tag = 'scoped memory for hiv_dqn_forward.1']
    #allocation4 [shape = 'u8[4096]{0}', space=vmem, size = 0x1000, scoped, tag = 'input window, operand 1, single buffered']
    #allocation5 [shape = 's32[1]{0}', space=sflag, size = 0x4, scoped, tag = 'scoped memory for hiv_dqn_forward.1']
    #allocation6 [shape = 'u8[8192]{0}', space=vmem, size = 0x2000, scoped, tag = 'input window, operand 5, single buffered']
    %11 = vsyncpa [#allocation3], 0
    %12 = vsyncpa [#allocation5], 0
    // Predicated region
    $region2: #{hiv_dqn_forward.1} parent=1 // pred_check
      _
    $region3: #{hiv_dqn_forward.1} parent=1 // pred_check_branch
      %14 = sbr.rel (0) target = $region5
    $region4: #{hiv_dqn_forward.1} parent=1 // pred_region
      %16 = vsyncadd [#allocation3], 0
      %s18 = sshll.u32 %s0, 4
      %s19 = int_to_ptr.hbm [resolvable:$true] %s18
      %s20 = sshll.u32 [#allocation2], 4
      %s21 = int_to_ptr.vmem [resolvable:$true] %s20
      %23 = dma.hbm_to_vmem [thread:$0]  %s19, 128, %s21, [#allocation3]
    $region5: #{hiv_dqn_forward.1} parent=1 // pred_fallthru
      _
    // Predicated region
    $region6: #{hiv_dqn_forward.1} parent=1 // pred_check
      _
    $region7: #{hiv_dqn_forward.1} parent=1 // pred_check_branch
      %25 = sbr.rel (0) target = $region9
    $region8: #{hiv_dqn_forward.1} parent=1 // pred_region
      %27 = vsyncadd [#allocation5], 0
      %s29 = sshll.u32 %s1, 4
      %s30 = int_to_ptr.hbm [resolvable:$true] %s29
      %s31 = sshll.u32 [#allocation4], 4
      %s32 = int_to_ptr.vmem [resolvable:$true] %s31
      %34 = dma.hbm_to_vmem [thread:$0]  %s30, 128, %s32, [#allocation5]
    $region9: #{hiv_dqn_forward.1} parent=1 // pred_fallthru
      _
    // Predicated region
    $region10: #{hiv_dqn_forward.1} parent=1 // pred_check
      _
    $region11: #{hiv_dqn_forward.1} parent=1 // pred_check_branch
      %36 = sbr.rel (0) target = $region13
    $region12: #{hiv_dqn_forward.1} parent=1 // pred_region
      _
    $region13: #{hiv_dqn_forward.1} parent=1 // pred_fallthru
      _
    // Predicated region
    $region14: #{hiv_dqn_forward.1} parent=1 // pred_check
      _
    $region15: #{hiv_dqn_forward.1} parent=1 // pred_check_branch
      %38 = sbr.rel (0) target = $region17
    $region16: #{hiv_dqn_forward.1} parent=1 // pred_region
      _
    $region17: #{hiv_dqn_forward.1} parent=1 // pred_fallthru
      _
    // Predicated region
    $region18: #{hiv_dqn_forward.1} parent=1 // pred_check
      _
    $region19: #{hiv_dqn_forward.1} parent=1 // pred_check_branch
      %40 = sbr.rel (0) target = $region21
    $region20: #{hiv_dqn_forward.1} parent=1 // pred_region
      _
    $region21: #{hiv_dqn_forward.1} parent=1 // pred_fallthru
      _
    // Predicated region
    $region22: #{hiv_dqn_forward.1} parent=1 // pred_check
      _
    $region23: #{hiv_dqn_forward.1} parent=1 // pred_check_branch
      %42 = sbr.rel (0) target = $region25
    $region24: #{hiv_dqn_forward.1} parent=1 // pred_region
      %44 = vsyncadd [#allocation5], 0
      %s45 = sshll.u32 %s5, 4
      %s46 = int_to_ptr.hbm [resolvable:$true] %s45
      %s47 = sshll.u32 [#allocation6], 4
      %s48 = int_to_ptr.vmem [resolvable:$true] %s47
      %53 = dma.hbm_to_vmem [thread:$0]  %s46, 256, %s48, [#allocation5], 128, 128, 8
    $region25: #{hiv_dqn_forward.1} parent=1 // pred_fallthru
      _
    // Predicated region
    $region26: #{hiv_dqn_forward.1} parent=1 // pred_check
      _
    $region27: #{hiv_dqn_forward.1} parent=1 // pred_check_branch
      %55 = sbr.rel (0) target = $region29
    $region28: #{hiv_dqn_forward.1} parent=1 // pred_region
      %57 = dma.done [#allocation3], 128
    $region29: #{hiv_dqn_forward.1} parent=1 // pred_fallthru
      _
    // Predicated region
    $region30: #{hiv_dqn_forward.1} parent=1 // pred_check
      _
    $region31: #{hiv_dqn_forward.1} parent=1 // pred_check_branch
      %59 = sbr.rel (0) target = $region33
    $region32: #{hiv_dqn_forward.1} parent=1 // pred_region
      %61 = dma.done [#allocation5], 128
    $region33: #{hiv_dqn_forward.1} parent=1 // pred_fallthru
      _
    // Predicated region
    $region34: #{hiv_dqn_forward.1} parent=1 // pred_check
      _
    $region35: #{hiv_dqn_forward.1} parent=1 // pred_check_branch
      %63 = sbr.rel (0) target = $region37
    $region36: #{hiv_dqn_forward.1} parent=1 // pred_region
      %65 = dma.done [#allocation5], 256
    $region37: #{hiv_dqn_forward.1} parent=1 // pred_fallthru
      _
    %v66 = vld [vmem:[#allocation2] sm:$0xff]
    %v67 = vld [vmem:[#allocation6] sm:$0xff]
    %v68 = vld [vmem:[#allocation6 + $0x8] sm:$0xff]
    %v69 = vld [vmem:[#allocation4] sm:$0x3f]
    %71 = vset.pattern.permute.xlu0 0
    %72 = vperm.xlu0 %71, %v66
    %v73 = vpop.permute.xlu0 %72
    %v75 = vperm.slane %v69, 0
    %v76 = vmul.f32 %v73, %v75
    %77 = vset.pattern.permute.xlu0 1
    %78 = vperm.xlu0 %77, %v66
    %v79 = vpop.permute.xlu0 %78
    %v81 = vperm.slane %v69, 1
    %v82 = vmul.f32 %v79, %v81
    %v83 = vadd.f32 %v76, %v82
    %84 = vset.pattern.permute.xlu0 2
    %85 = vperm.xlu0 %84, %v66
    %v86 = vpop.permute.xlu0 %85
    %v88 = vperm.slane %v69, 2
    %v89 = vmul.f32 %v86, %v88
    %v90 = vadd.f32 %v83, %v89
    %91 = vset.pattern.permute.xlu0 3
    %92 = vperm.xlu0 %91, %v66
    %v93 = vpop.permute.xlu0 %92
    %v95 = vperm.slane %v69, 3
    %v96 = vmul.f32 %v93, %v95
    %v97 = vadd.f32 %v90, %v96
    %98 = vset.pattern.permute.xlu0 4
    %99 = vperm.xlu0 %98, %v66
    %v100 = vpop.permute.xlu0 %99
    %v102 = vperm.slane %v69, 4
    %v103 = vmul.f32 %v100, %v102
    %v104 = vadd.f32 %v97, %v103
    %105 = vset.pattern.permute.xlu0 5
    %106 = vperm.xlu0 %105, %v66
    %v107 = vpop.permute.xlu0 %106
    %v109 = vperm.slane %v69, 5
    %v110 = vmul.f32 %v107, %v109
    %v111 = vadd.f32 %v104, %v110
    %v112 = vperm.slane %v67, 0
    %v113 = vadd.f32 %v111, %v112
    %vm114 = vcmask 523264
    %v115 = vsel %vm114, %v113, 0.0
    %116 = vadd.xlane.f32.xlu0 %v115
    %v117 = vpop.xlane.xlu0 %116
    %v118 = vrcp.pop 64.0
    %v119 = vmul.f32 64.0, %v118
    %v120 = vsub.f32 1.0, %v119
    %v121 = vmul.f32 %v118, %v120
    %v122 = vadd.f32 %v118, %v121
    %vm123 = vweird.f32 %v118
    %v124 = vsel %vm123, %v118, %v122
    %v125 = vmul.f32 %v117, %v124
    %v126 = vsub.f32 %v113, %v125
    %v127 = vmul.f32 %v126, %v126
    %v128 = vsel %vm114, %v127, 0.0
    %129 = vadd.xlane.f32.xlu0 %v128
    %v130 = vpop.xlane.xlu0 %129
    %v131 = vmul.f32 %v130, %v124
    %v132 = vadd.f32 %v131, 1e-05
    %v133 = vrsqrt.pop %v132
    %v134 = vmul.f32 %v133, %v132
    %v135 = vmul.f32 %v134, %v133
    %v136 = vmul.f32 0.5, %v135
    %v137 = vsub.f32 1.5, %v136
    %v138 = vmul.f32 %v133, %v137
    %vm139 = vweird.f32 %v132
    %vm140 = vweird.f32 %v133
    %vm141 = vmor %vm139, %vm140
    %v142 = vsel %vm141, %v133, %v138
    %v143 = vmul.f32 %v126, %v142
    %v144 = vperm.slane %v67, 1
    %v145 = vmul.f32 %v143, %v144
    %v146 = vperm.slane %v67, 2
    %v147 = vadd.f32 %v145, %v146
    %v148 = vmax.f32 %v147, 0.0
    %v149 = vld [vmem:[%s2] sm:$0xff]
    %v150 = vld [vmem:[%s2 + $0x8] sm:$0xff]
    %v151 = vld [vmem:[%s2 + $0x10] sm:$0xff]
    %v152 = vld [vmem:[%s2 + $0x18] sm:$0xff]
    %v153 = vld [vmem:[%s2 + $0x20] sm:$0xff]
    %v154 = vld [vmem:[%s2 + $0x28] sm:$0xff]
    %v155 = vld [vmem:[%s2 + $0x30] sm:$0xff]
    %v156 = vld [vmem:[%s2 + $0x38] sm:$0xff]
    %v157 = vperm.slane %v67, 3
    %v159 = vsel %vm114, %v148, 0
    %161 = vmatpush.msra.mxu0 0.0
    %162 = vmatpush.msra.mxu0 0.0
    %163 = vmatpush.msra.mxu0 0.0
    %164 = vmatpush.msra.mxu0 0.0
    %165 = vmatpush.msra.mxu0 0.0
    %166 = vmatpush.msra.mxu0 0.0
    %167 = vmatpush.msra.mxu0 0.0
    %168 = vmatpush.msra.mxu0 0.0
    %169 = vmatpush.msra.mxu0 %v156
    %170 = vmatpush.msra.mxu0 %v155
    %171 = vmatpush.msra.mxu0 %v154
    %172 = vmatpush.msra.mxu0 %v153
    %173 = vmatpush.msra.mxu0 %v152
    %174 = vmatpush.msra.mxu0 %v151
    %175 = vmatpush.msra.mxu0 %v150
    %176 = vmatpush.msra.mxu0 %v149
    %177 = vmatmul.f32.gmra.mxu0 %v159
    %v178 = vpop.f32.mrf.mxu0
    %v179 = vadd.f32 %v157, %v178
    %180 = vdwg.mxu0
    %vm181 = vcmask 261120
    %v182 = vsel %vm181, %v179, 0.0
    %183 = vadd.xlane.f32.xlu0 %v182
    %v184 = vpop.xlane.xlu0 %183
    %v185 = vrcp.pop 32.0
    %v186 = vmul.f32 32.0, %v185
    %v187 = vsub.f32 1.0, %v186
    %v188 = vmul.f32 %v185, %v187
    %v189 = vadd.f32 %v185, %v188
    %vm190 = vweird.f32 %v185
    %v191 = vsel %vm190, %v185, %v189
    %v192 = vmul.f32 %v184, %v191
    %v193 = vsub.f32 %v179, %v192
    %v194 = vmul.f32 %v193, %v193
    %v195 = vsel %vm181, %v194, 0.0
    %196 = vadd.xlane.f32.xlu0 %v195
    %v197 = vpop.xlane.xlu0 %196
    %v198 = vmul.f32 %v197, %v191
    %200 = vrot.lane.b32.xlu0 %v179, 96
    %v201 = vpop.permute.xlu0 %200
    %v203 = vsel %vm181, %v201, 0.0
    %204 = vadd.xlane.f32.xlu0 %v203
    %v205 = vpop.xlane.xlu0 %204
    %v206 = vmul.f32 %v205, %v191
    %v207 = vsub.f32 %v179, %v206
    %v208 = vmul.f32 %v207, %v207
    %210 = vrot.lane.b32.xlu0 %v208, 96
    %v211 = vpop.permute.xlu0 %210
    %v213 = vsel %vm181, %v211, 0.0
    %214 = vadd.xlane.f32.xlu0 %v213
    %v215 = vpop.xlane.xlu0 %214
    %v216 = vmul.f32 %v215, %v191
    %v217 = vlaneseq
    %v218 = vand.u32 %v217, 127
    %vm219 = vcmp.lt.s32.totalorder %v218, 32
    %v220 = vsel %vm219, 1, 0
    %vm221 = vcmp.eq.s32.totalorder %v220, 1
    %v222 = vsel %vm221, %v192, %v206
    %v223 = vsel %vm221, %v198, %v216
    %v224 = vadd.f32 %v223, 1e-05
    %v225 = vrsqrt.pop %v224
    %v226 = vmul.f32 %v225, %v224
    %v227 = vmul.f32 %v226, %v225
    %v228 = vmul.f32 0.5, %v227
    %v229 = vsub.f32 1.5, %v228
    %v230 = vmul.f32 %v225, %v229
    %vm231 = vweird.f32 %v224
    %vm232 = vweird.f32 %v225
    %vm233 = vmor %vm231, %vm232
    %v234 = vsel %vm233, %v225, %v230
    %v235 = vsub.f32 %v179, %v222
    %v236 = vmul.f32 %v235, %v234
    %v237 = vperm.slane %v67, 4
    %v238 = vmul.f32 %v236, %v237
    %v239 = vperm.slane %v67, 5
    %v240 = vadd.f32 %v238, %v239
    %v241 = vmax.f32 %v240, 0.0
    %v242 = vld [vmem:[%s3] sm:$0xff]
    %v243 = vld [vmem:[%s3 + $0x8] sm:$0xff]
    %v244 = vld [vmem:[%s3 + $0x10] sm:$0xff]
    %v245 = vld [vmem:[%s3 + $0x18] sm:$0xff]
    %v246 = vld [vmem:[%s3 + $0x20] sm:$0xff]
    %v247 = vld [vmem:[%s3 + $0x28] sm:$0xff]
    %v248 = vld [vmem:[%s3 + $0x30] sm:$0xff]
    %v249 = vld [vmem:[%s3 + $0x38] sm:$0xff]
    %v250 = vperm.slane %v67, 6
    %v252 = vsel %vm114, %v241, 0
    %254 = vmatpush.msra.mxu0 0.0
    %255 = vmatpush.msra.mxu0 0.0
    %256 = vmatpush.msra.mxu0 0.0
    %257 = vmatpush.msra.mxu0 0.0
    %258 = vmatpush.msra.mxu0 0.0
    %259 = vmatpush.msra.mxu0 0.0
    %260 = vmatpush.msra.mxu0 0.0
    %261 = vmatpush.msra.mxu0 0.0
    %262 = vmatpush.msra.mxu0 %v249
    %263 = vmatpush.msra.mxu0 %v248
    %264 = vmatpush.msra.mxu0 %v247
    %265 = vmatpush.msra.mxu0 %v246
    %266 = vmatpush.msra.mxu0 %v245
    %267 = vmatpush.msra.mxu0 %v244
    %268 = vmatpush.msra.mxu0 %v243
    %269 = vmatpush.msra.mxu0 %v242
    %270 = vmatmul.f32.gmra.mxu0 %v252
    %v271 = vpop.f32.mrf.mxu0
    %v272 = vadd.f32 %v250, %v271
    %273 = vdwg.mxu0
    %v274 = vsel %vm181, %v272, 0.0
    %275 = vadd.xlane.f32.xlu0 %v274
    %v276 = vpop.xlane.xlu0 %275
    %v277 = vmul.f32 %v276, %v191
    %v278 = vsub.f32 %v272, %v277
    %v279 = vmul.f32 %v278, %v278
    %v280 = vsel %vm181, %v279, 0.0
    %281 = vadd.xlane.f32.xlu0 %v280
    %v282 = vpop.xlane.xlu0 %281
    %v283 = vmul.f32 %v282, %v191
    %v284 = vadd.f32 %v283, 1e-05
    %v285 = vrsqrt.pop %v284
    %v286 = vmul.f32 %v285, %v284
    %v287 = vmul.f32 %v286, %v285
    %v288 = vmul.f32 0.5, %v287
    %v289 = vsub.f32 1.5, %v288
    %v290 = vmul.f32 %v285, %v289
    %vm291 = vweird.f32 %v284
    %vm292 = vweird.f32 %v285
    %vm293 = vmor %vm291, %vm292
    %v294 = vsel %vm293, %v285, %v290
    %v295 = vmul.f32 %v278, %v294
    %v296 = vperm.slane %v67, 7
    %v297 = vmul.f32 %v295, %v296
    %v298 = vperm.slane %v68, 0
    %v299 = vadd.f32 %v297, %v298
    %v300 = vmax.f32 %v299, 0.0
    %v301 = vld [vmem:[%s4] sm:$0xff]
    %v302 = vld [vmem:[%s4 + $0x8] sm:$0xff]
    %v303 = vld [vmem:[%s4 + $0x10] sm:$0xff]
    %v304 = vld [vmem:[%s4 + $0x18] sm:$0xff]
    %v305 = vperm.slane %v68, 1
    %v307 = vsel %vm181, %v300, 0
    %309 = vmatpush.msra.mxu0 0.0
    %310 = vmatpush.msra.mxu0 0.0
    %311 = vmatpush.msra.mxu0 0.0
    %312 = vmatpush.msra.mxu0 0.0
    %313 = vmatpush.msra.mxu0 0.0
    %314 = vmatpush.msra.mxu0 0.0
    %315 = vmatpush.msra.mxu0 0.0
    %316 = vmatpush.msra.mxu0 0.0
    %317 = vmatpush.msra.mxu0 0.0
    %318 = vmatpush.msra.mxu0 0.0
    %319 = vmatpush.msra.mxu0 0.0
    %320 = vmatpush.msra.mxu0 0.0
    %321 = vmatpush.msra.mxu0 %v304
    %322 = vmatpush.msra.mxu0 %v303
    %323 = vmatpush.msra.mxu0 %v302
    %324 = vmatpush.msra.mxu0 %v301
    %325 = vmatmul.f32.gmra.mxu0 %v307
    %v326 = vpop.f32.mrf.mxu0
    %v327 = vadd.f32 %v305, %v326
    %328 = vdwg.mxu0
    %329 = vst [vmem:[%s6] sm:$0xff] %v327
    // Predicated region
    $region38: #{hiv_dqn_forward.1} parent=1 // pred_check
      _
    $region39: #{hiv_dqn_forward.1} parent=1 // pred_check_branch
      %331 = sbr.rel (0) target = $region41
    $region40: #{hiv_dqn_forward.1} parent=1 // pred_region
      _
    $region41: #{hiv_dqn_forward.1} parent=1 // pred_fallthru
      _
    // Predicated region
    $region42: #{hiv_dqn_forward.1} parent=1 // pred_check
      _
    $region43: #{hiv_dqn_forward.1} parent=1 // pred_check_branch
      %333 = sbr.rel (0) target = $region45
    $region44: #{hiv_dqn_forward.1} parent=1 // pred_region
      _
    $region45: #{hiv_dqn_forward.1} parent=1 // pred_fallthru
      _
    %334 = vsyncpa [#allocation3], 1
    %335 = vsyncpa [#allocation5], 1

</llo_original>
